<compile_context>
chip_gen: v7x
topology: tpu7x:2x2x1
jax: 0.10.0
libtpu: 0.0.40
codegen_flags: <defaults>
</compile_context>

<pallas_src>
import functools
import math

import jax
import jax.numpy as jnp
from jax.experimental import pallas as pl
from jax.experimental.pallas import tpu as pltpu

_LANE = 128
_HALO = 128          # width of one lane-aligned halo block
_MAX_TILE = 32768    # cap on the length tile


def _round_up(x, m):
    return (x + m - 1) // m * m


def _pad8(c):
    return max(8, _round_up(int(c), 8))


def _vmem_capacity_bytes():
    try:
        info = pltpu.get_tpu_info()
        cap = int(getattr(info, "vmem_capacity_bytes", 0) or 0)
        if cap > 0:
            return cap
    except Exception:
        pass
    return 64 << 20  # conservative (v7x-sized) fallback


def _working_set_bytes(tile_l, layer_dims, in_isz, comp_isz, out_isz):
    """Rough per-step VMEM need, including (8,128) sublane padding and the
    double-buffered pipeline blocks."""
    n_layers = len(layer_dims)
    w_loaded = tile_l + _HALO * (1 + n_layers)
    c0 = layer_dims[0][1]
    c_last = layer_dims[-1][2]
    est = 2 * _pad8(c0) * w_loaded * in_isz          # double-buffered input blocks
    est += 2 * _pad8(c_last) * tile_l * out_isz      # double-buffered output block
    live = _pad8(c0) * w_loaded * 4                  # masked f32 input window
    for i, (k, ci, co) in enumerate(layer_dims):
        out_w = tile_l if i == n_layers - 1 else tile_l + _HALO * (n_layers - i)
        live += _pad8(k * ci + 1) * out_w * comp_isz     # im2col operand (scratch)
        live += 2 * _pad8(co) * out_w * 4                # f32 result + masked copy
    return est + live + live // 2                        # 1.5x slop on live values


def _choose_tile_l(l_out, layer_dims, in_isz, comp_isz, out_isz, budget_bytes):
    tl = min(_MAX_TILE, _round_up(max(l_out, 1), _LANE))
    while tl > _LANE and _working_set_bytes(tl, layer_dims, in_isz, comp_isz,
                                            out_isz) > budget_bytes:
        tl = max(_LANE, (tl // 2) // _LANE * _LANE)
    return tl


def _fused_conv1d_kernel(*refs, taps, offs, out_lens, out_ws, tile_l, pad_left,
                         in_len, n_right, neg_slope, compute_dtype):
    """Fused stack of stride-1 Conv1d layers + trailing LeakyReLU, one length tile.

    refs = (x_left, x_body, x_right_0..x_right_{n_right-1},
            w_0..w_{M-1}, out, im2col_scratch)
      x_*     : (1, C0, 128 / tile_l / 128)   blocks of the raw input
      w_i     : (Cout_i, K_i*Cin_i + 1)       im2col weights, bias folded as last col
      out     : (1, Cout_last, tile_l)
      scratch : (max_rows, max_width)         im2col operand staging (compute_dtype)
    """
    n_layers = len(taps)
    x_refs = refs[:2 + n_right]
    w_refs = refs[2 + n_right:2 + n_right + n_layers]
    o_ref = refs[2 + n_right + n_layers]
    stk_ref = refs[2 + n_right + n_layers + 1]

    t = pl.program_id(1)
    w_loaded = tile_l + _HALO * (1 + n_right)

    # Window = [left halo | body | right halos]; every piece is 128-lane aligned.
    x = jnp.concatenate([xr[0] for xr in x_refs], axis=-1)        # (C0, w_loaded)

    # Zero every column whose real input coordinate is out of range.  This both
    # provides the conv zero padding and masks garbage from partial / clamped
    # boundary blocks, so the activations are never padded in HBM.
    col = jax.lax.broadcasted_iota(jnp.int32, (1, w_loaded), 1)
    r = col + (t * tile_l - _HALO)                                # real coordinate
    x = jnp.where((r >= 0) & (r < in_len), x, 0.0)

    act = x.astype(compute_dtype)

    for i in range(n_layers):
        k = taps[i]
        c_in = (w_refs[i].shape[1] - 1) // k
        last = i == n_layers - 1
        base = (_HALO - pad_left) if last else 0      # aligns final layer with the tile
        out_w = out_ws[i]
        rows = k * c_in + 1

        # im2col: K statically shifted, lane-aligned-width copies of the input
        # plus a ones row (folded bias), so the layer is ONE MXU contraction
        # over K*Cin+1 instead of K tiny matmuls + (K-1) full-width f32 adds.
        for tap in range(k):
            stk_ref[tap * c_in:(tap + 1) * c_in, :out_w] = \
                act[:, base + tap: base + tap + out_w]
        stk_ref[rows - 1:rows, :out_w] = jnp.ones((1, out_w), compute_dtype)

        out = jnp.dot(w_refs[i][...], stk_ref[:rows, :out_w],
                      preferred_element_type=jnp.float32)         # (Cout, out_w) f32

        if last:
            out = jnp.where(out > 0, out, neg_slope * out)        # LeakyReLU
            o_ref[0] = out.astype(o_ref.dtype)                    # lane-dense store
        else:
            # Columns outside this layer's true output range act as the NEXT
            # layer's zero padding (row mask, broadcast over channels).
            q = r[:, :out_w] + pad_left
            valid = (q >= offs[i]) & (q < offs[i] + out_lens[i])
            act = jnp.where(valid, out, 0.0).astype(compute_dtype)


def fused_conv1d_stack(x, layers, *, neg_slope=0.01, compute_dtype=jnp.float32,
                       out_dtype=None, tile_l=None):
    """Run a stack of Conv1d(stride=1) layers + trailing LeakyReLU as ONE pallas_call.

    x      : (N, C0, L) float array
    layers : sequence of (w (Cout, Cin, K), b (Cout,), padding)
    """
    N, C0, L0 = x.shape
    n_layers = len(layers)
    taps, pads, c_ins, c_outs, out_lens = [], [], [], [], []
    L = L0
    cin = C0
    for (w, b, p) in layers:
        co, ci, k = w.shape
        assert ci == cin, "channel mismatch in conv stack"
        taps.append(int(k)); pads.append(int(p))
        c_ins.append(int(ci)); c_outs.append(int(co))
        L = L + 2 * p - k + 1
        out_lens.append(int(L))
        cin = co
    L_out = out_lens[-1]
    C_last = c_outs[-1]
    pad_left = sum(pads)
    halo_needed = sum(k - 1 for k in taps)
    assert halo_needed <= _HALO, "combined receptive field too wide for 128-lane halos"
    # TODO(synk): widen the halo blocks for combined receptive fields > 129 taps.

    out_dtype = jnp.dtype(x.dtype if out_dtype is None else out_dtype)
    compute_dtype = jnp.dtype(compute_dtype)
    in_isz = jnp.dtype(x.dtype).itemsize
    layer_dims = list(zip(taps, c_ins, c_outs))

    # Per-generation VMEM budget (v7x: 64 MiB physical, v5e/v6e: 128 MiB).
    cap = _vmem_capacity_bytes()
    vmem_limit = int(min(max(cap * 3 // 4, 32 << 20), 96 << 20))
    if tile_l is None:
        tile_l = _choose_tile_l(L_out, layer_dims, in_isz, compute_dtype.itemsize,
                                out_dtype.itemsize, budget_bytes=vmem_limit // 2)
    assert tile_l % _LANE == 0 and tile_l >= _LANE
    num_tiles = -(-L_out // tile_l)
    # v7x megacore: keep >= 2 grid programs when possible.
    while N * num_tiles < 2 and tile_l > _LANE:
        tile_l = max(_LANE, (tile_l // 2) // _LANE * _LANE)
        num_tiles = -(-L_out // tile_l)

    est = _working_set_bytes(tile_l, layer_dims, in_isz, compute_dtype.itemsize,
                             out_dtype.itemsize)
    if est > vmem_limit:
        vmem_limit = int(min(max(vmem_limit, est + est // 4), cap * 9 // 10))

    n_right = n_layers                               # 128-lane right-halo blocks
    w_loaded = tile_l + _HALO * (1 + n_right)

    # Boundaries are handled in-kernel; the input is only (right-)padded in HBM
    # when a block would be larger than the whole sequence (tiny L).  For real
    # sequence lengths there is NO host-side copy of the activations.
    if tile_l > L0:
        L_safe = num_tiles * tile_l + _HALO * n_right
        x_safe = jnp.pad(x, ((0, 0), (0, 0), (0, L_safe - L0)))
    else:
        L_safe = L0
        x_safe = x

    # Weights: (Cout, Cin, K) -> (Cout, K*Cin + 1); bias folded as the last column
    # (multiplied by an in-kernel ones row).
    w_args, w_specs = [], []
    for (w, b, _p) in layers:
        co, ci, k = w.shape
        w_mat = jnp.transpose(w, (0, 2, 1)).reshape(co, k * ci)
        w_aug = jnp.concatenate([w_mat, b.reshape(co, 1)], axis=1).astype(compute_dtype)
        w_args.append(w_aug)
        w_specs.append(pl.BlockSpec(w_aug.shape, lambda n, t: (0, 0)))

    tiles128 = tile_l // _LANE
    max128 = (L_safe - 1) // _LANE
    max_body = (L_safe - 1) // tile_l

    # Clamped block index maps: a clamp can only fire when the whole block lies
    # past the end of the data, in which case every column it feeds is zeroed by
    # the in-kernel coordinate mask.
    def left_map(n, t):
        return (n, 0, jnp.clip(t * tiles128 - 1, 0, max128))

    def body_map(n, t):
        return (n, 0, jnp.clip(t, 0, max_body))

    def make_right_map(j):
        def right_map(n, t):
            return (n, 0, jnp.clip((t + 1) * tiles128 + j, 0, max128))
        return right_map

    in_specs = [pl.BlockSpec((1, C0, _HALO), left_map),
                pl.BlockSpec((1, C0, tile_l), body_map)]
    in_specs += [pl.BlockSpec((1, C0, _HALO), make_right_map(j)) for j in range(n_right)]
    in_specs += w_specs

    # Exact output shape (partial last block) whenever the tile fits inside it;
    # only tiny sequences fall back to a padded output + cheap slice.
    out_alloc = L_out if tile_l <= L_out else num_tiles * tile_l
    out_spec = pl.BlockSpec((1, C_last, tile_l), lambda n, t: (n, 0, t))

    offs = tuple(sum(pads[i + 1:]) for i in range(n_layers))
    out_ws = tuple(tile_l if i == n_layers - 1 else tile_l + _HALO * (n_layers - i)
                   for i in range(n_layers))
    rows_max = max(k * ci + 1 for (k, ci, _c) in layer_dims)
    width_max = max(out_ws)

    kernel = functools.partial(
        _fused_conv1d_kernel,
        taps=tuple(taps), offs=offs, out_lens=tuple(out_lens), out_ws=out_ws,
        tile_l=tile_l, pad_left=pad_left, in_len=L0, n_right=n_right,
        neg_slope=neg_slope, compute_dtype=compute_dtype)

    flops = 0
    for i, (k, ci, co) in enumerate(layer_dims):
        flops += 2 * N * num_tiles * out_ws[i] * co * (k * ci + 1)
    bytes_acc = (N * num_tiles * C0 * w_loaded * in_isz
                 + N * C_last * L_out * out_dtype.itemsize
                 + sum(int(w.size) * compute_dtype.itemsize for w in w_args))

    out = pl.pallas_call(
        kernel,
        out_shape=jax.ShapeDtypeStruct((N, C_last, out_alloc), out_dtype),
        grid_spec=pltpu.PrefetchScalarGridSpec(
            num_scalar_prefetch=0,
            grid=(N, num_tiles),
            in_specs=in_specs,
            out_specs=out_spec,
            scratch_shapes=[pltpu.VMEM((rows_max, width_max), compute_dtype)]),
        compiler_params=pltpu.CompilerParams(
            dimension_semantics=("parallel", "parallel"),
            vmem_limit_bytes=int(vmem_limit)),
        cost_estimate=pl.CostEstimate(flops=int(flops), transcendentals=0,
                                      bytes_accessed=int(bytes_acc)),
    )(x_safe, x_safe, *([x_safe] * n_right), *w_args)

    if out_alloc != L_out:
        out = out[:, :, :L_out]
    return out


def _init_conv_params(key, c_in, c_out, k):
    """Deterministic init mimicking PyTorch Conv1d default U(-1/sqrt(fan_in), +)."""
    kw, kb = jax.random.split(key)
    bound = 1.0 / math.sqrt(c_in * k)
    w = jax.random.uniform(kw, (c_out, c_in, k), jnp.float32, -bound, bound)
    b = jax.random.uniform(kb, (c_out,), jnp.float32, -bound, bound)
    return w, b


class ConvLayerPallas:
    """JAX/Pallas equivalent of models/Layers.py::ConvLayer (LeakyReLU activation)."""

    def __init__(self, input_dim, output_dim, hidden_dim, kernel_size,
                 neg_slope=0.01, compute_dtype=jnp.float32, out_dtype=None, key=None):
        if key is None:
            key = jax.random.PRNGKey(0)
        self.neg_slope = neg_slope
        self.compute_dtype = compute_dtype
        self.out_dtype = out_dtype
        if isinstance(kernel_size, tuple):
            k1, k2 = kernel_size
            key1, key2 = jax.random.split(key)
            w1, b1 = _init_conv_params(key1, input_dim, hidden_dim, k1)
            w2, b2 = _init_conv_params(key2, hidden_dim, output_dim, k2)
            self.layers = [(w1, b1, k1 // 2), (w2, b2, k2 // 2)]
        else:
            k = kernel_size
            w, b = _init_conv_params(key, input_dim, output_dim, k)
            self.layers = [(w, b, k // 2)]

    def __call__(self, x):
        # Both the 1-conv and the 2-conv variants run as a SINGLE fused pallas_call.
        return fused_conv1d_stack(x, self.layers, neg_slope=self.neg_slope,
                                  compute_dtype=self.compute_dtype,
                                  out_dtype=self.out_dtype)


def _reference(x, layers, neg_slope):
    """Pure-JAX reference using lax.conv_general_dilated."""
    n = len(layers)
    for i, (w, b, pad) in enumerate(layers):
        x = jax.lax.conv_general_dilated(
            x, w, window_strides=(1,), padding=[(pad, pad)],
            dimension_numbers=("NCH", "OIH", "NCH"))
        x = x + b[None, :, None]
        if i == n - 1:
            x = jnp.where(x > 0, x, neg_slope * x)
    return x


if __name__ == "__main__":
    key = jax.random.PRNGKey(0)
    kx, kp1, kp2 = jax.random.split(key, 3)

    # Small shapes consistent with the module: (batch=2, input_dim=4, seq_len=16).
    N, C_in, Lseq = 2, 4, 16
    C_out, C_hid = 8, 16
    x = jax.random.normal(kx, (N, C_in, Lseq), jnp.float32)

    # Single-conv variant (int kernel_size), f32 compute.
    layer = ConvLayerPallas(C_in, C_out, C_hid, kernel_size=3, key=kp1)
    out = jax.block_until_ready(layer(x))
    ref = _reference(x, layer.layers, layer.neg_slope)
    assert out.shape == (N, C_out, Lseq), out.shape
    assert jnp.allclose(out, ref, atol=1e-4, rtol=1e-4)

    # Two-conv variant (tuple kernel_size) fused into one pallas_call, f32 compute.
    layer2 = ConvLayerPallas(C_in, C_out, C_hid, kernel_size=(3, 5), key=kp2)
    out2 = jax.block_until_ready(layer2(x))
    ref2 = _reference(x, layer2.layers, layer2.neg_slope)
    assert out2.shape == (N, C_out, Lseq), out2.shape
    assert jnp.allclose(out2, ref2, atol=1e-4, rtol=1e-4)

    # bf16 MXU operands (v6e/v7x path), f32 accumulation -> looser tolerance.
    layer3 = ConvLayerPallas(C_in, C_out, C_hid, kernel_size=(3, 5),
                             compute_dtype=jnp.bfloat16, key=kp2)
    out3 = jax.block_until_ready(layer3(x))
    assert out3.shape == (N, C_out, Lseq)
    assert jnp.allclose(out3.astype(jnp.float32), ref2, atol=5e-2, rtol=5e-2)

    print("KERNEL_OK")
</pallas_src>

<mosaic_0001>
module attributes {stable_mosaic.version = 11 : i64} {
  func.func @_fused_conv1d_kernel(%arg0: i32, %arg1: i32, %arg2: memref<1x4x128xf32, #tpu.memory_space<vmem>>, %arg3: memref<1x4x128xf32, #tpu.memory_space<vmem>>, %arg4: memref<1x4x128xf32, #tpu.memory_space<vmem>>, %arg5: memref<8x13xf32, #tpu.memory_space<vmem>>, %arg6: memref<1x8x128xf32, #tpu.memory_space<vmem>>, %arg7: memref<13x128xf32, #tpu.memory_space<vmem>>) attributes {dimension_semantics = [#tpu.dimension_semantics<parallel>, #tpu.dimension_semantics<parallel>], iteration_bounds = array<i64: 2, 1>, scalar_prefetch = 0 : i64, scratch_operands = 1 : i64, tpu.core_type = #tpu.core_type<tc>, window_params = [{transform_indices = @transform_0, window_bounds = array<i64: 1, 4, 128>}, {transform_indices = @transform_1, window_bounds = array<i64: 1, 4, 128>}, {transform_indices = @transform_2, window_bounds = array<i64: 1, 4, 128>}, {pipeline_mode = #tpu.pipeline_mode<synchronous>, transform_indices = @transform_3, window_bounds = array<i64: 8, 13>}, {transform_indices = @transform_4, window_bounds = array<i64: 1, 8, 128>}]} {
    %c0 = arith.constant 0 : index
    %c0_0 = arith.constant 0 : index
    %c0_1 = arith.constant 0 : index
    %0 = vector.load %arg2[%c0, %c0_0, %c0_1] : memref<1x4x128xf32, #tpu.memory_space<vmem>>, vector<1x4x128xf32>
    %1 = vector.shape_cast %0 : vector<1x4x128xf32> to vector<4x128xf32>
    %c0_2 = arith.constant 0 : index
    %c0_3 = arith.constant 0 : index
    %c0_4 = arith.constant 0 : index
    %2 = vector.load %arg3[%c0_2, %c0_3, %c0_4] : memref<1x4x128xf32, #tpu.memory_space<vmem>>, vector<1x4x128xf32>
    %3 = vector.shape_cast %2 : vector<1x4x128xf32> to vector<4x128xf32>
    %c0_5 = arith.constant 0 : index
    %c0_6 = arith.constant 0 : index
    %c0_7 = arith.constant 0 : index
    %4 = vector.load %arg4[%c0_5, %c0_6, %c0_7] : memref<1x4x128xf32, #tpu.memory_space<vmem>>, vector<1x4x128xf32>
    %5 = vector.shape_cast %4 : vector<1x4x128xf32> to vector<4x128xf32>
    %6 = tpu.concatenate %1, %3, %5 in 1 : vector<4x128xf32>, vector<4x128xf32>, vector<4x128xf32> -> vector<4x384xf32>
    %7 = tpu.iota {dimensions = array<i32: 1>} : vector<1x384xi32>
    %c128_i32 = arith.constant 128 : i32
    %8 = arith.muli %arg1, %c128_i32 : i32
    %c128_i32_8 = arith.constant 128 : i32
    %9 = arith.subi %8, %c128_i32_8 : i32
    %10 = vector.broadcast %9 : i32 to vector<1x384xi32>
    %11 = arith.addi %7, %10 : vector<1x384xi32>
    %c0_i32 = arith.constant 0 : i32
    %12 = vector.broadcast %c0_i32 : i32 to vector<1x384xi32>
    %13 = arith.cmpi sge, %11, %12 : vector<1x384xi32>
    %c16_i32 = arith.constant 16 : i32
    %14 = vector.broadcast %c16_i32 : i32 to vector<1x384xi32>
    %15 = arith.cmpi slt, %11, %14 : vector<1x384xi32>
    %16 = arith.andi %13, %15 : vector<1x384xi1>
    %cst = arith.constant 0.000000e+00 : f32
    %17 = vector.shape_cast %16 : vector<1x384xi1> to vector<1x384xi1>
    %18 = vector.broadcast %17 : vector<1x384xi1> to vector<4x384xi1>
    %19 = vector.broadcast %cst : f32 to vector<4x384xf32>
    %20 = arith.select %18, %6, %19 : vector<4x384xi1>, vector<4x384xf32>
    %21 = vector.extract_strided_slice %20 {offsets = [0, 127], sizes = [4, 128], strides = [1, 1]} : vector<4x384xf32> to vector<4x128xf32>
    %c0_9 = arith.constant 0 : index
    %c0_10 = arith.constant 0 : index
    %22 = vector.load %arg7[%c0_9, %c0_10] : memref<13x128xf32, #tpu.memory_space<vmem>>, vector<4x128xf32>
    tpu.vector_store %arg7[%c0_9, %c0_10], %21 {strides = array<i32>} : memref<13x128xf32, #tpu.memory_space<vmem>>, vector<4x128xf32>,
    %23 = vector.extract_strided_slice %20 {offsets = [0, 128], sizes = [4, 128], strides = [1, 1]} : vector<4x384xf32> to vector<4x128xf32>
    %c4 = arith.constant 4 : index
    %c0_11 = arith.constant 0 : index
    %24 = vector.load %arg7[%c4, %c0_11] : memref<13x128xf32, #tpu.memory_space<vmem>>, vector<4x128xf32>
    tpu.vector_store %arg7[%c4, %c0_11], %23 {strides = array<i32>} : memref<13x128xf32, #tpu.memory_space<vmem>>, vector<4x128xf32>,
    %25 = vector.extract_strided_slice %20 {offsets = [0, 129], sizes = [4, 128], strides = [1, 1]} : vector<4x384xf32> to vector<4x128xf32>
    %c8 = arith.constant 8 : index
    %c0_12 = arith.constant 0 : index
    %26 = vector.load %arg7[%c8, %c0_12] : memref<13x128xf32, #tpu.memory_space<vmem>>, vector<4x128xf32>
    tpu.vector_store %arg7[%c8, %c0_12], %25 {strides = array<i32>} : memref<13x128xf32, #tpu.memory_space<vmem>>, vector<4x128xf32>,
    %cst_13 = arith.constant 1.000000e+00 : f32
    %27 = vector.broadcast %cst_13 : f32 to vector<1x128xf32>
    %c12 = arith.constant 12 : index
    %c0_14 = arith.constant 0 : index
    %28 = vector.load %arg7[%c12, %c0_14] : memref<13x128xf32, #tpu.memory_space<vmem>>, vector<1x128xf32>
    tpu.vector_store %arg7[%c12, %c0_14], %27 {strides = array<i32>} : memref<13x128xf32, #tpu.memory_space<vmem>>, vector<1x128xf32>,
    %c0_15 = arith.constant 0 : index
    %c0_16 = arith.constant 0 : index
    %29 = vector.load %arg5[%c0_15, %c0_16] : memref<8x13xf32, #tpu.memory_space<vmem>>, vector<8x13xf32>
    %c0_17 = arith.constant 0 : index
    %c0_18 = arith.constant 0 : index
    %30 = vector.load %arg7[%c0_17, %c0_18] : memref<13x128xf32, #tpu.memory_space<vmem>>, vector<13x128xf32>
    %cst_19 = arith.constant dense<0.000000e+00> : vector<8x128xf32>
    %31 = tpu.matmul %29, %30, %cst_19 {dimension_numbers = #tpu.dot_dimension_numbers<[1], [0], [0], [1], [0, 0, 1, 1], [], []>} : vector<8x13xf32>, vector<13x128xf32>, vector<8x128xf32> -> vector<8x128xf32>
    %cst_20 = arith.constant 0.000000e+00 : f32
    %32 = vector.broadcast %cst_20 : f32 to vector<8x128xf32>
    %33 = arith.cmpf ogt, %31, %32 : vector<8x128xf32>
    %cst_21 = arith.constant 0.00999999977 : f32
    %34 = vector.broadcast %cst_21 : f32 to vector<8x128xf32>
    %35 = arith.mulf %34, %31 : vector<8x128xf32>
    %36 = arith.select %33, %31, %35 : vector<8x128xi1>, vector<8x128xf32>
    %c0_22 = arith.constant 0 : index
    %c0_23 = arith.constant 0 : index
    %c0_24 = arith.constant 0 : index
    %37 = vector.load %arg6[%c0_22, %c0_23, %c0_24] : memref<1x8x128xf32, #tpu.memory_space<vmem>>, vector<1x8x128xf32>
    %38 = vector.shape_cast %37 : vector<1x8x128xf32> to vector<8x128xf32>
    %39 = vector.shape_cast %36 : vector<8x128xf32> to vector<1x8x128xf32>
    tpu.vector_store %arg6[%c0_22, %c0_23, %c0_24], %39 {strides = array<i32>} : memref<1x8x128xf32, #tpu.memory_space<vmem>>, vector<1x8x128xf32>,
    return
  }
  func.func @transform_0(%arg0: i32, %arg1: i32) -> (i32, i32, i32) {
    %c1_i32 = arith.constant 1 : i32
    %0 = arith.muli %arg1, %c1_i32 : i32
    %c1_i32_0 = arith.constant 1 : i32
    %1 = arith.subi %0, %c1_i32_0 : i32
    %c0_i32 = arith.constant 0 : i32
    %c1_i32_1 = arith.constant 1 : i32
    %2 = arith.maxsi %c0_i32, %1 : i32
    %3 = arith.minsi %c1_i32_1, %2 : i32
    %c0_i32_2 = arith.constant 0 : i32
    %c0_i32_3 = arith.constant 0 : i32
    return %arg0, %c0_i32_2, %3 : i32, i32, i32
  }
  func.func @transform_1(%arg0: i32, %arg1: i32) -> (i32, i32, i32) {
    %c0_i32 = arith.constant 0 : i32
    %c1_i32 = arith.constant 1 : i32
    %0 = arith.maxsi %c0_i32, %arg1 : i32
    %1 = arith.minsi %c1_i32, %0 : i32
    %c0_i32_0 = arith.constant 0 : i32
    %c0_i32_1 = arith.constant 0 : i32
    return %arg0, %c0_i32_0, %1 : i32, i32, i32
  }
  func.func @transform_2(%arg0: i32, %arg1: i32) -> (i32, i32, i32) {
    %c1_i32 = arith.constant 1 : i32
    %0 = arith.addi %arg1, %c1_i32 : i32
    %c1_i32_0 = arith.constant 1 : i32
    %1 = arith.muli %0, %c1_i32_0 : i32
    %c0_i32 = arith.constant 0 : i32
    %2 = arith.addi %1, %c0_i32 : i32
    %c0_i32_1 = arith.constant 0 : i32
    %c1_i32_2 = arith.constant 1 : i32
    %3 = arith.maxsi %c0_i32_1, %2 : i32
    %4 = arith.minsi %c1_i32_2, %3 : i32
    %c0_i32_3 = arith.constant 0 : i32
    %c0_i32_4 = arith.constant 0 : i32
    return %arg0, %c0_i32_3, %4 : i32, i32, i32
  }
  func.func @transform_3(%arg0: i32, %arg1: i32) -> (i32, i32) {
    %c0_i32 = arith.constant 0 : i32
    %c0_i32_0 = arith.constant 0 : i32
    %c0_i32_1 = arith.constant 0 : i32
    return %c0_i32, %c0_i32_0 : i32, i32
  }
  func.func @transform_4(%arg0: i32, %arg1: i32) -> (i32, i32, i32) {
    %c0_i32 = arith.constant 0 : i32
    %c0_i32_0 = arith.constant 0 : i32
    return %arg0, %c0_i32, %arg1 : i32, i32, i32
  }
}

</mosaic_0001>

<llo_original>
// kernel: tpu_custom_call.1
$region0: #{tpu_custom_call.1}
  #allocation0 [shape = 'u32[]', space=smem, size = 0x4, offset = 0x4, fixed_abs, tag = 'smem constant byte address 0x4 - core index']
  #allocation1 [shape = 'u32[144,128]{1,0:T(1,128)}', space=vmem, size = 0x12000, scoped, tag = 'internal scratch']
  #allocation2 [shape = 'f32[13,128]{1,0:T(8,128)}', space=vmem, size = 0x2000, scoped, tag = 'scratch operand']
  %s0 = inlined_call_operand.hbm [shape: f32[2,4,256], index: 0, kind: input, shape index: {}]
  %s1 = inlined_call_operand.hbm [shape: f32[2,4,256], index: 1, kind: input, shape index: {}]
  %s2 = inlined_call_operand.hbm [shape: f32[2,4,256], index: 2, kind: input, shape index: {}]
  %s3 = inlined_call_operand.vmem [shape: f32[8,13], index: 3, kind: input, shape index: {}]
  %s4 = inlined_call_operand.hbm [shape: f32[2,8,128], index: 4, kind: output, shape index: {}]
  %s5 = sld [smem:[#allocation0]]
  $region61: #{tpu_custom_call.1} parent=0
    _
  %s7 = ssub.s32 1, %s5
  %s8 = scalar_select 0, %s7, %s5
  $region1: #{tpu_custom_call.1} parent=0
    #allocation3 [shape = 'u8[4096]{0}', space=vmem, size = 0x1000, scoped, tag = 'input window, operand 0']
    #allocation4 [shape = 's32[2]{0}', space=sflag, size = 0x8, scoped, tag = 'scoped memory for tpu_custom_call.1']
    #allocation5 [shape = 's32[2]{0}', space=sflag, size = 0x8, scoped, tag = 'scoped memory for tpu_custom_call.1']
    #allocation6 [shape = 'u8[4096]{0}', space=vmem, size = 0x1000, scoped, tag = 'input window, operand 1']
    #allocation7 [shape = 's32[2]{0}', space=sflag, size = 0x8, scoped, tag = 'scoped memory for tpu_custom_call.1']
    #allocation8 [shape = 'u8[4096]{0}', space=vmem, size = 0x1000, scoped, tag = 'input window, operand 2']
    #allocation9 [shape = 'u8[8192]{0}', space=vmem, size = 0x2000, scoped, tag = 'output window, operand 0']
    %9 = vsyncpa [#allocation4], 0
    %s10 = scalar_lea.sflag [#allocation4], 1
    %11 = vsyncpa %s10, 0
    %12 = vsyncpa [#allocation7], 0
    %s13 = scalar_lea.sflag [#allocation7], 1
    %14 = vsyncpa %s13, 0
    %15 = vsyncpa [#allocation5], 0
    %s16 = scalar_lea.sflag [#allocation5], 1
    %17 = vsyncpa %s16, 0
    loop: start=0, step=1, limit=4
    $region2: #{tpu_custom_call.1} parent=1 // loop_pre_header
      _
    $region3: #{tpu_custom_call.1} parent=1 // loop_header
      %s19 = sphi 0, %s23
      %p20 = scmp.ge.s32.totalorder %s19, 4
      %s26 = sphi 0, %s38
      %s27 = sphi 0, %s34
      %s28 = sphi 0, %s26
      %s29 = sphi 0, %s27
      %s30 = sphi 0, %s28
      %s31 = sphi 0, %s29
      %s53 = sphi 0, %s55
      %s56 = sphi 0, %s53
      %s57 = sphi 0, %s56
      %s73 = sphi 0, %s57
      %s89 = sphi 0, %s91
      %s92 = sphi 0, %s89
      %s93 = sphi 0, %s92
      %s109 = sphi 0, %s93
      %s127 = sphi 0, %s129
      %s130 = sphi 0, %s127
      %s131 = sphi 0, %s130
      %s147 = sphi 0, %s131
      %s151 = sphi 0, %s151
      %s153 = sphi 0, %s151
      %s154 = sphi 0, %s153
      %s168 = sphi 0, %s154
      %s176 = sphi 0, %s178
      %s179 = sphi 0, %s176
      %s180 = sphi 0, %s179
      %s196 = sphi 0, %s180
    $region4: #{tpu_custom_call.1} parent=1 // loop_header_branch
      %22 = sbr.rel (%p20) target = $region8
    $region5: #{tpu_custom_call.1} parent=1 // loop_body
      %s24 = ssub.s32 %s19, 1
      %s25 = ssub.s32 %s19, 2
      %s32 = sadd.s32 1, %s27
      %p33 = scmp.ge.s32.totalorder %s32, 1
      %s34 = scalar_select %p33, 0, %s32
      %s35 = sadd.s32 1, %s26
      %s36 = scalar_select %p33, %s35, %s26
      %p37 = scmp.ge.s32.totalorder %s36, 2
      %s38 = scalar_select %p37, 0, %s36
      %s39 = ssub.s32 %s27, 1
      %p40 = scmp.gt.s32.totalorder %s39, 0
      %s41 = scalar_select %p40, %s39, 0
      %p42 = scmp.lt.s32.totalorder %s41, 1
      %s43 = scalar_select %p42, %s41, 1
      %s44 = ssub.s32 %s34, 1
      %p45 = scmp.gt.s32.totalorder %s44, 0
      %s46 = scalar_select %p45, %s44, 0
      %p47 = scmp.lt.s32.totalorder %s46, 1
      %s48 = scalar_select %p47, %s46, 1
      %s49 = ssub.s32 %s26, %s38
      %s50 = ssub.s32 %s43, %s48
      %s51 = sor.u32 %s49, %s50
      %p52 = scmp.eq.s32.totalorder %s51, 0
      %s54 = sadd.s32 %s53, 1
      %s55 = scalar_select %p52, %s53, %s54
      %p58 = pneg %p52
      %p59 = scmp.eq.s32.totalorder %s19, 1
      %p60 = por %p58, %p59
      %p61 = scmp.ne.s32.totalorder %s53, %s56
      %p62 = scmp.eq.s32.totalorder %s19, 0
      %p63 = por %p61, %p62
      %p64 = scmp.ne.s32.totalorder %s53, %s56
      %p65 = scmp.eq.s32.totalorder %s24, 1
      %p66 = por %p64, %p65
      %p67 = scmp.ne.s32.totalorder %s56, %s57
      %p68 = scmp.eq.s32.totalorder %s24, 0
      %p69 = por %p67, %p68
      %p70 = scmp.ne.s32.totalorder %s56, %s57
      %p71 = scmp.eq.s32.totalorder %s25, 1
      %p72 = por %p70, %p71
      %p74 = scmp.ne.s32.totalorder %s57, %s73
      %p75 = scmp.eq.s32.totalorder %s25, 0
      %p76 = por %p74, %p75
      %p77 = scmp.gt.s32.totalorder %s27, 0
      %s78 = scalar_select %p77, %s27, 0
      %p79 = scmp.lt.s32.totalorder %s78, 1
      %s80 = scalar_select %p79, %s78, 1
      %p81 = scmp.gt.s32.totalorder %s34, 0
      %s82 = scalar_select %p81, %s34, 0
      %p83 = scmp.lt.s32.totalorder %s82, 1
      %s84 = scalar_select %p83, %s82, 1
      %s85 = ssub.s32 %s26, %s38
      %s86 = ssub.s32 %s80, %s84
      %s87 = sor.u32 %s85, %s86
      %p88 = scmp.eq.s32.totalorder %s87, 0
      %s90 = sadd.s32 %s89, 1
      %s91 = scalar_select %p88, %s89, %s90
      %p94 = pneg %p88
      %p95 = scmp.eq.s32.totalorder %s19, 1
      %p96 = por %p94, %p95
      %p97 = scmp.ne.s32.totalorder %s89, %s92
      %p98 = scmp.eq.s32.totalorder %s19, 0
      %p99 = por %p97, %p98
      %p100 = scmp.ne.s32.totalorder %s89, %s92
      %p101 = scmp.eq.s32.totalorder %s24, 1
      %p102 = por %p100, %p101
      %p103 = scmp.ne.s32.totalorder %s92, %s93
      %p104 = scmp.eq.s32.totalorder %s24, 0
      %p105 = por %p103, %p104
      %p106 = scmp.ne.s32.totalorder %s92, %s93
      %p107 = scmp.eq.s32.totalorder %s25, 1
      %p108 = por %p106, %p107
      %p110 = scmp.ne.s32.totalorder %s93, %s109
      %p111 = scmp.eq.s32.totalorder %s25, 0
      %p112 = por %p110, %p111
      %s113 = sadd.s32 %s27, 1
      %p114 = scmp.gt.s32.totalorder %s113, 0
      %s115 = scalar_select %p114, %s113, 0
      %p116 = scmp.lt.s32.totalorder %s115, 1
      %s117 = scalar_select %p116, %s115, 1
      %s118 = sadd.s32 %s34, 1
      %p119 = scmp.gt.s32.totalorder %s118, 0
      %s120 = scalar_select %p119, %s118, 0
      %p121 = scmp.lt.s32.totalorder %s120, 1
      %s122 = scalar_select %p121, %s120, 1
      %s123 = ssub.s32 %s26, %s38
      %s124 = ssub.s32 %s117, %s122
      %s125 = sor.u32 %s123, %s124
      %p126 = scmp.eq.s32.totalorder %s125, 0
      %s128 = sadd.s32 %s127, 1
      %s129 = scalar_select %p126, %s127, %s128
      %p132 = pneg %p126
      %p133 = scmp.eq.s32.totalorder %s19, 1
      %p134 = por %p132, %p133
      %p135 = scmp.ne.s32.totalorder %s127, %s130
      %p136 = scmp.eq.s32.totalorder %s19, 0
      %p137 = por %p135, %p136
      %p138 = scmp.ne.s32.totalorder %s127, %s130
      %p139 = scmp.eq.s32.totalorder %s24, 1
      %p140 = por %p138, %p139
      %p141 = scmp.ne.s32.totalorder %s130, %s131
      %p142 = scmp.eq.s32.totalorder %s24, 0
      %p143 = por %p141, %p142
      %p144 = scmp.ne.s32.totalorder %s130, %s131
      %p145 = scmp.eq.s32.totalorder %s25, 1
      %p146 = por %p144, %p145
      %p148 = scmp.ne.s32.totalorder %s131, %s147
      %p149 = scmp.eq.s32.totalorder %s25, 0
      %p150 = por %p148, %p149
      %s152 = sadd.s32 %s151, 1
      %p155 = scmp.eq.s32.totalorder %s19, 1
      %p156 = scmp.ne.s32.totalorder %s151, %s153
      %p157 = scmp.eq.s32.totalorder %s19, 0
      %p158 = por %p156, %p157
      %p159 = scmp.ne.s32.totalorder %s151, %s153
      %p160 = scmp.eq.s32.totalorder %s24, 1
      %p161 = por %p159, %p160
      %p162 = scmp.ne.s32.totalorder %s153, %s154
      %p163 = scmp.eq.s32.totalorder %s24, 0
      %p164 = por %p162, %p163
      %p165 = scmp.ne.s32.totalorder %s153, %s154
      %p166 = scmp.eq.s32.totalorder %s25, 1
      %p167 = por %p165, %p166
      %p169 = scmp.ne.s32.totalorder %s154, %s168
      %p170 = scmp.eq.s32.totalorder %s25, 0
      %p171 = por %p169, %p170
      %s172 = ssub.s32 %s26, %s38
      %s173 = ssub.s32 %s27, %s34
      %s174 = sor.u32 %s172, %s173
      %p175 = scmp.eq.s32.totalorder %s174, 0
      %s177 = sadd.s32 %s176, 1
      %s178 = scalar_select %p175, %s176, %s177
      %p181 = pneg %p175
      %p182 = scmp.eq.s32.totalorder %s19, 1
      %p183 = por %p181, %p182
      %p184 = scmp.ne.s32.totalorder %s176, %s179
      %p185 = scmp.eq.s32.totalorder %s19, 0
      %p186 = por %p184, %p185
      %p187 = scmp.ne.s32.totalorder %s176, %s179
      %p188 = scmp.eq.s32.totalorder %s24, 1
      %p189 = por %p187, %p188
      %p190 = scmp.ne.s32.totalorder %s179, %s180
      %p191 = scmp.eq.s32.totalorder %s24, 0
      %p192 = por %p190, %p191
      %p193 = scmp.ne.s32.totalorder %s179, %s180
      %p194 = scmp.eq.s32.totalorder %s25, 1
      %p195 = por %p193, %p194
      %p197 = scmp.ne.s32.totalorder %s180, %s196
      %p198 = scmp.eq.s32.totalorder %s25, 0
      %p199 = por %p197, %p198
      %p200 = scmp.le.s32.totalorder 1, %s19
      %p201 = scmp.lt.s32.totalorder %s19, 3
      %p202 = pnand %p200, %p201
      %p203 = pneg %p202
      // Predicated region
      $region9: #{tpu_custom_call.1} parent=5 // pred_check
        _
      $region10: #{tpu_custom_call.1} parent=5 // pred_check_branch
        %205 = sbr.rel (%p202) target = $region12
      $region11: #{tpu_custom_call.1} parent=5 // pred_region
        %s206 = ssub.s32 %s19, 1
        // Predicated region
        $region13: #{tpu_custom_call.1} parent=11 // pred_check
          %p207 = pneg %p164
        $region14: #{tpu_custom_call.1} parent=11 // pred_check_branch
          %209 = sbr.rel (%p207) target = $region16
        $region15: #{tpu_custom_call.1} parent=11 // pred_region
          _
        $region16: #{tpu_custom_call.1} parent=11 // pred_fallthru
          _
      $region12: #{tpu_custom_call.1} parent=5 // pred_fallthru
        _
      %p210 = scmp.lt.s32.totalorder %s19, 2
      // Predicated region
      $region17: #{tpu_custom_call.1} parent=5 // pred_check
        %p211 = pneg %p210
      $region18: #{tpu_custom_call.1} parent=5 // pred_check_branch
        %213 = sbr.rel (%p211) target = $region20
      $region19: #{tpu_custom_call.1} parent=5 // pred_region
        // Predicated region
        $region21: #{tpu_custom_call.1} parent=19 // pred_check
          %p214 = pneg %p63
        $region22: #{tpu_custom_call.1} parent=19 // pred_check_branch
          %216 = sbr.rel (%p214) target = $region24
        $region23: #{tpu_custom_call.1} parent=19 // pred_region
          %s217 = sand.u32 %s53, 1
          %s218 = scalar_lea.sflag [#allocation4], %s217
          %s219 = sand.u32 %s53, 1
          %s220 = smul.addr %s219, 4
          %s221 = scalar_lea.vmem [#allocation3], %s220
          %s222 = ssub.s32 %s27, 1
          %p223 = scmp.gt.s32.totalorder %s222, 0
          %s224 = scalar_select %p223, %s222, 0
          %p225 = scmp.lt.s32.totalorder %s224, 1
          %s226 = scalar_select %p225, %s224, 1
          %s228 = ssub.s32 64, 64
          %229 = vsyncadd %s218, %s228
          %s230 = smul.addr %s26, 2
          %s231 = sadd.s32 %s226, %s230
          %s232 = smul.addr %s231, 64
          %s233 = scalar_lea.hbm %s0, %s232
          %s235 = sshll.u32 %s221, 4
          %s236 = int_to_ptr.vmem [resolvable:$true] %s235
          %238 = dma.hbm_to_vmem [thread:$0]  %s233, 64, %s236, %s218
        $region24: #{tpu_custom_call.1} parent=19 // pred_fallthru
          _
        // Predicated region
        $region25: #{tpu_custom_call.1} parent=19 // pred_check
          %p239 = pneg %p99
        $region26: #{tpu_custom_call.1} parent=19 // pred_check_branch
          %241 = sbr.rel (%p239) target = $region28
        $region27: #{tpu_custom_call.1} parent=19 // pred_region
          %s242 = sand.u32 %s19, 1
          %s243 = scalar_lea.sflag [#allocation7], %s242
          %s244 = sand.u32 %s89, 1
          %s245 = smul.addr %s244, 4
          %s246 = scalar_lea.vmem [#allocation6], %s245
          %p247 = scmp.gt.s32.totalorder %s27, 0
          %s248 = scalar_select %p247, %s27, 0
          %p249 = scmp.lt.s32.totalorder %s248, 1
          %s250 = scalar_select %p249, %s248, 1
          %s252 = ssub.s32 64, 64
          %253 = vsyncadd %s243, %s252
          %s254 = smul.addr %s26, 2
          %s255 = sadd.s32 %s250, %s254
          %s256 = smul.addr %s255, 64
          %s257 = scalar_lea.hbm %s1, %s256
          %s259 = sshll.u32 %s246, 4
          %s260 = int_to_ptr.vmem [resolvable:$true] %s259
          %262 = dma.hbm_to_vmem [thread:$0]  %s257, 64, %s260, %s243
        $region28: #{tpu_custom_call.1} parent=19 // pred_fallthru
          _
        // Predicated region
        $region29: #{tpu_custom_call.1} parent=19 // pred_check
          %p263 = pneg %p137
        $region30: #{tpu_custom_call.1} parent=19 // pred_check_branch
          %265 = sbr.rel (%p263) target = $region32
        $region31: #{tpu_custom_call.1} parent=19 // pred_region
          %s266 = sand.u32 %s19, 1
          %s267 = scalar_lea.sflag [#allocation7], %s266
          %s268 = sand.u32 %s127, 1
          %s269 = smul.addr %s268, 4
          %s270 = scalar_lea.vmem [#allocation8], %s269
          %s271 = sadd.s32 %s27, 1
          %p272 = scmp.gt.s32.totalorder %s271, 0
          %s273 = scalar_select %p272, %s271, 0
          %p274 = scmp.lt.s32.totalorder %s273, 1
          %s275 = scalar_select %p274, %s273, 1
          %s277 = ssub.s32 64, 64
          %278 = vsyncadd %s267, %s277
          %s279 = smul.addr %s26, 2
          %s280 = sadd.s32 %s275, %s279
          %s281 = smul.addr %s280, 64
          %s282 = scalar_lea.hbm %s2, %s281
          %s284 = sshll.u32 %s270, 4
          %s285 = int_to_ptr.vmem [resolvable:$true] %s284
          %287 = dma.hbm_to_vmem [thread:$0]  %s282, 64, %s285, %s267
        $region32: #{tpu_custom_call.1} parent=19 // pred_fallthru
          _
      $region20: #{tpu_custom_call.1} parent=5 // pred_fallthru
        _
      %p288 = scmp.le.s32.totalorder 1, %s19
      %p289 = scmp.lt.s32.totalorder %s19, 3
      %p290 = pnand %p288, %p289
      %p291 = pneg %p290
      // Predicated region
      $region33: #{tpu_custom_call.1} parent=5 // pred_check
        _
      $region34: #{tpu_custom_call.1} parent=5 // pred_check_branch
        %293 = sbr.rel (%p290) target = $region36
      $region35: #{tpu_custom_call.1} parent=5 // pred_region
        %s294 = ssub.s32 %s19, 1
        %s295 = sand.u32 %s56, 1
        %s296 = scalar_lea.sflag [#allocation4], %s295
        %s297 = sand.u32 %s56, 1
        %s298 = smul.addr %s297, 4
        %s299 = scalar_lea.vmem [#allocation3], %s298
        // Predicated region
        $region37: #{tpu_custom_call.1} parent=35 // pred_check
          %p300 = pneg %p69
        $region38: #{tpu_custom_call.1} parent=35 // pred_check_branch
          %302 = sbr.rel (%p300) target = $region40
        $region39: #{tpu_custom_call.1} parent=35 // pred_region
          %303 = dma.done %s296, 64
        $region40: #{tpu_custom_call.1} parent=35 // pred_fallthru
          _
        %s304 = sand.u32 %s24, 1
        %s305 = scalar_lea.sflag [#allocation7], %s304
        %s306 = sand.u32 %s92, 1
        %s307 = smul.addr %s306, 4
        %s308 = scalar_lea.vmem [#allocation6], %s307
        // Predicated region
        $region41: #{tpu_custom_call.1} parent=35 // pred_check
          %p309 = pneg %p105
        $region42: #{tpu_custom_call.1} parent=35 // pred_check_branch
          %311 = sbr.rel (%p309) target = $region44
        $region43: #{tpu_custom_call.1} parent=35 // pred_region
          %312 = dma.done %s305, 64
        $region44: #{tpu_custom_call.1} parent=35 // pred_fallthru
          _
        %s313 = sand.u32 %s24, 1
        %s314 = scalar_lea.sflag [#allocation7], %s313
        %s315 = sand.u32 %s130, 1
        %s316 = smul.addr %s315, 4
        %s317 = scalar_lea.vmem [#allocation8], %s316
        // Predicated region
        $region45: #{tpu_custom_call.1} parent=35 // pred_check
          %p318 = pneg %p143
        $region46: #{tpu_custom_call.1} parent=35 // pred_check_branch
          %320 = sbr.rel (%p318) target = $region48
        $region47: #{tpu_custom_call.1} parent=35 // pred_region
          %321 = dma.done %s314, 64
        $region48: #{tpu_custom_call.1} parent=35 // pred_fallthru
          _
        %s322 = sand.u32 %s56, 1
        %s323 = scalar_lea.sflag [#allocation4], %s322
        %s324 = sand.u32 %s56, 1
        %s325 = smul.addr %s324, 4
        %s326 = scalar_lea.vmem [#allocation3], %s325
        %p327 = pneg %p69
        %p328 = pneg %p66
        %s329 = sand.u32 %s24, 1
        %s330 = scalar_lea.sflag [#allocation7], %s329
        %s331 = sand.u32 %s92, 1
        %s332 = smul.addr %s331, 4
        %s333 = scalar_lea.vmem [#allocation6], %s332
        %p334 = pneg %p105
        %p335 = pneg %p102
        %s336 = sand.u32 %s24, 1
        %s337 = scalar_lea.sflag [#allocation7], %s336
        %s338 = sand.u32 %s130, 1
        %s339 = smul.addr %s338, 4
        %s340 = scalar_lea.vmem [#allocation8], %s339
        %p341 = pneg %p143
        %p342 = pneg %p140
        %p343 = pneg %p164
        %p344 = pneg %p161
        %p345 = pneg %p192
        %p346 = pneg %p189
        %s347 = sand.u32 %s179, 1
        %s348 = scalar_lea.sflag [#allocation5], %s347
        %s349 = sand.u32 %s179, 1
        %s350 = smul.addr %s349, 8
        %s351 = scalar_lea.vmem [#allocation9], %s350
        %s352 = ssub.s32 %s29, 1
        %p353 = scmp.gt.s32.totalorder %s352, 0
        %s354 = scalar_select %p353, %s352, 0
        %p355 = scmp.lt.s32.totalorder %s354, 1
        %s356 = scalar_select %p355, %s354, 1
        %p357 = scmp.gt.s32.totalorder %s29, 0
        %s358 = scalar_select %p357, %s29, 0
        %p359 = scmp.lt.s32.totalorder %s358, 1
        %s360 = scalar_select %p359, %s358, 1
        %s361 = sadd.s32 %s29, 1
        %p362 = scmp.gt.s32.totalorder %s361, 0
        %s363 = scalar_select %p362, %s361, 0
        %p364 = scmp.lt.s32.totalorder %s363, 1
        %s365 = scalar_select %p364, %s363, 1
        %v366 = vld [vmem:[%s299] sm:$0xf]
        %v367 = vld [vmem:[%s308] sm:$0xf]
        %v368 = vld [vmem:[%s317] sm:$0xf]
        %v369 = vlaneseq
        %v370 = vand.u32 %v369, 127
        %v371 = vadd.s32 %v370, 128
        %v372 = vadd.s32 %v370, 256
        %s373 = smul.u32 %s29, 128
        %s374 = ssub.s32 %s373, 128
        %v375 = vstv %s374
        %v376 = vadd.s32 %v370, %v375
        %v377 = vadd.s32 %v371, %v375
        %v378 = vadd.s32 %v372, %v375
        %vm379 = vcmp.ge.s32.totalorder %v376, 0
        %vm380 = vcmp.ge.s32.totalorder %v377, 0
        %vm381 = vcmp.ge.s32.totalorder %v378, 0
        %vm382 = vcmp.lt.s32.totalorder %v376, 16
        %vm383 = vcmp.lt.s32.totalorder %v377, 16
        %vm384 = vcmp.lt.s32.totalorder %v378, 16
        %vm385 = vmand %vm379, %vm382
        %vm386 = vmand %vm380, %vm383
        %vm387 = vmand %vm381, %vm384
        %v388 = vsel %vm385, 1, 0
        %v389 = vsel %vm386, 1, 0
        %v390 = vsel %vm387, 1, 0
        %vm391 = vcmp.eq.s32.totalorder %v388, 1
        %vm392 = vcmp.eq.s32.totalorder %v389, 1
        %vm393 = vcmp.eq.s32.totalorder %v390, 1
        %v394 = vsel %vm391, %v366, 0.0
        %v395 = vsel %vm392, %v367, 0.0
        %v396 = vsel %vm393, %v368, 0.0
        %399 = vrot.lane.b32.xlu0 %v394, 1
        %v400 = vpop.permute.xlu0 %399
        %401 = vrot.lane.b32.xlu0 %v395, 1
        %v402 = vpop.permute.xlu0 %401
        %vm403 = vcmask 7168
        %v404 = vsel %vm403, %v400, %v402
        %406 = vst [vmem:[#allocation2] sm:$0xf] %v404
        %407 = vst [vmem:[#allocation2 + $0x4] sm:$0xf] %v395
        %409 = vrot.lane.b32.xlu0 %v395, 127
        %v410 = vpop.permute.xlu0 %409
        %411 = vrot.lane.b32.xlu0 %v396, 127
        %v412 = vpop.permute.xlu0 %411
        %vm413 = vcmask 1039360
        %v414 = vsel %vm413, %v410, %v412
        %416 = vst [vmem:[#allocation2 + $0x8] sm:$0xf] %v414
        %417 = vst [vmem:[#allocation2 + $0xc] sm:$0x1] 1.0
        %v418 = vld [vmem:[%s3] sm:$0xff]
        %v419 = vld [vmem:[#allocation2] sm:$0xff]
        %v420 = vld [vmem:[#allocation2 + $0x8] sm:$0x1f]
        %vm421 = vcmask 105472
        %v423 = vsel %vm421, %v418, 0
        %vm425 = vcmask 1044480
        %v427 = vsel %vm425, %v420, 0
        %429 = vmatprep.subr.mxu0 0.0
        %430 = vmatpush1.msra.mxu0 %v419
        %431 = vmatprep.subr.mxu0 0.0
        %432 = vmatpush1.msra.mxu0 %v427
        %433 = vmatprep.subr.mxu0 0.0
        %434 = vmatpush1.msra.mxu0 0.0
        %435 = vmatprep.subr.mxu0 0.0
        %436 = vmatpush1.msra.mxu0 0.0
        %437 = vmatprep.subr.mxu0 0.0
        %438 = vmatpush1.msra.mxu0 0.0
        %439 = vmatprep.subr.mxu0 0.0
        %440 = vmatpush1.msra.mxu0 0.0
        %441 = vmatprep.subr.mxu0 0.0
        %442 = vmatpush1.msra.mxu0 0.0
        %443 = vmatprep.subr.mxu0 0.0
        %444 = vmatpush1.msra.mxu0 0.0
        %445 = vmatprep.subr.mxu0 0.0
        %446 = vmatpush1.msra.mxu0 0.0
        %447 = vmatprep.subr.mxu0 0.0
        %448 = vmatpush1.msra.mxu0 0.0
        %449 = vmatprep.subr.mxu0 0.0
        %450 = vmatpush1.msra.mxu0 0.0
        %451 = vmatprep.subr.mxu0 0.0
        %452 = vmatpush1.msra.mxu0 0.0
        %453 = vmatprep.subr.mxu0 0.0
        %454 = vmatpush1.msra.mxu0 0.0
        %455 = vmatprep.subr.mxu0 0.0
        %456 = vmatpush1.msra.mxu0 0.0
        %457 = vmatprep.subr.mxu0 0.0
        %458 = vmatpush1.msra.mxu0 0.0
        %459 = vmatprep.subr.mxu0 0.0
        %460 = vmatpush1.msra.mxu0 0.0
        %461 = vmatprep.subr.mxu0 0.0
        %462 = vmatpush1.msra.mxu0 0.0
        %463 = vmatprep.subr.mxu0 0.0
        %464 = vmatpush1.msra.mxu0 0.0
        %465 = vmatprep.subr.mxu0 0.0
        %466 = vmatpush1.msra.mxu0 0.0
        %467 = vmatprep.subr.mxu0 0.0
        %468 = vmatpush1.msra.mxu0 0.0
        %469 = vmatprep.subr.mxu0 0.0
        %470 = vmatpush1.msra.mxu0 0.0
        %471 = vmatprep.subr.mxu0 0.0
        %472 = vmatpush1.msra.mxu0 0.0
        %473 = vmatprep.subr.mxu0 0.0
        %474 = vmatpush1.msra.mxu0 0.0
        %475 = vmatprep.subr.mxu0 0.0
        %476 = vmatpush1.msra.mxu0 0.0
        %477 = vmatprep.subr.mxu0 0.0
        %478 = vmatpush1.msra.mxu0 0.0
        %479 = vmatprep.subr.mxu0 0.0
        %480 = vmatpush1.msra.mxu0 0.0
        %481 = vmatprep.subr.mxu0 0.0
        %482 = vmatpush1.msra.mxu0 0.0
        %483 = vmatprep.subr.mxu0 0.0
        %484 = vmatpush1.msra.mxu0 0.0
        %485 = vmatprep.subr.mxu0 0.0
        %486 = vmatpush1.msra.mxu0 0.0
        %487 = vmatprep.subr.mxu0 0.0
        %488 = vmatpush1.msra.mxu0 0.0
        %489 = vmatprep.subr.mxu0 0.0
        %490 = vmatpush1.msra.mxu0 0.0
        %491 = vmatprep.subr.mxu0 0.0
        %492 = vmatpush1.msra.mxu0 0.0
        %493 = vmatprep.mubr.f32.mxu0 0.0
        %494 = vmatmul.mubr.f32.gmra.mrb[0].mxu0 %v423
        %v495 = vpop.f32.mrb[0].mxu0
        %v496 = vadd.f32 0.0, %v495
        %v497 = vpop.f32.mrb[0].mxu0
        %498 = vdwg.mxu0
        %vm499 = vcmp.gt.f32.partialorder %v496, 0.0
        %v500 = vmul.f32 %v496, 0.01
        %v501 = vsel %vm499, %v496, %v500
        %502 = vst [vmem:[%s351] sm:$0xff] %v501
        %s503 = sand.u32 %s179, 1
        %s504 = scalar_lea.sflag [#allocation5], %s503
        %s505 = sand.u32 %s179, 1
        %s506 = smul.addr %s505, 8
        %s507 = scalar_lea.vmem [#allocation9], %s506
        // Predicated region
        $region49: #{tpu_custom_call.1} parent=35 // pred_check
          %p508 = pneg %p189
        $region50: #{tpu_custom_call.1} parent=35 // pred_check_branch
          %510 = sbr.rel (%p508) target = $region52
        $region51: #{tpu_custom_call.1} parent=35 // pred_region
          %s512 = ssub.s32 128, 128
          %513 = vsyncadd %s504, %s512
          %s514 = sadd.s32 %s29, %s28
          %s515 = smul.addr %s514, 128
          %s516 = scalar_lea.hbm %s4, %s515
          %s518 = sshll.u32 %s507, 4
          %s519 = int_to_ptr.vmem [resolvable:$true] %s518
          %521 = dma.vmem_to_hbm [thread:$0]  %s519, 128, %s516, %s504
        $region52: #{tpu_custom_call.1} parent=35 // pred_fallthru
          _
      $region36: #{tpu_custom_call.1} parent=5 // pred_fallthru
        _
      %p522 = scmp.le.s32.totalorder 2, %s19
      // Predicated region
      $region53: #{tpu_custom_call.1} parent=5 // pred_check
        %p523 = pneg %p522
      $region54: #{tpu_custom_call.1} parent=5 // pred_check_branch
        %525 = sbr.rel (%p523) target = $region56
      $region55: #{tpu_custom_call.1} parent=5 // pred_region
        %s526 = ssub.s32 %s19, 2
        // Predicated region
        $region57: #{tpu_custom_call.1} parent=55 // pred_check
          %p527 = pneg %p195
        $region58: #{tpu_custom_call.1} parent=55 // pred_check_branch
          %529 = sbr.rel (%p527) target = $region60
        $region59: #{tpu_custom_call.1} parent=55 // pred_region
          %s530 = sand.u32 %s180, 1
          %s531 = scalar_lea.sflag [#allocation5], %s530
          %s532 = sand.u32 %s180, 1
          %s533 = smul.addr %s532, 8
          %s534 = scalar_lea.vmem [#allocation9], %s533
          %535 = dma.done %s531, 128
        $region60: #{tpu_custom_call.1} parent=55 // pred_fallthru
          _
      $region56: #{tpu_custom_call.1} parent=5 // pred_fallthru
        _
    $region6: #{tpu_custom_call.1} parent=1 // loop_footer
      %s23 = sadd.s32 1, %s19
    $region7: #{tpu_custom_call.1} parent=1 // loop_footer_branch
      %18 = sbr.rel target = $region3
    $region8: #{tpu_custom_call.1} parent=1 // loop_exit
      _
    %536 = vsyncpa [#allocation4], 1
    %s537 = scalar_lea.sflag [#allocation4], 1
    %538 = vsyncpa %s537, 1
    %539 = vsyncpa [#allocation7], 1
    %s540 = scalar_lea.sflag [#allocation7], 1
    %541 = vsyncpa %s540, 1
    %542 = vsyncpa [#allocation5], 1
    %s543 = scalar_lea.sflag [#allocation5], 1
    %544 = vsyncpa %s543, 1

</llo_original>
